<compile_context>
chip_gen: v7x
topology: tpu7x:2x2x1
jax: 0.10.0
libtpu: 0.0.40
codegen_flags: <defaults>
</compile_context>

<pallas_src>
import functools

import jax
import jax.numpy as jnp
from jax import lax
from jax.experimental import pallas as pl
from jax.experimental.pallas import tpu as pltpu


def fcunit_kernel(x_full_ref, x_col_ref, gamma_ref, beta_ref, wt_ref, b_ref,
                  mask_ref, o_ref, y_scratch, *, eps: float):
    # ---- BatchNorm1d + ReLU: computed once, kept resident in VMEM scratch ----
    @pl.when(pl.program_id(0) == 0)
    def _():
        x = x_full_ref[...].astype(jnp.float32)                      # (N, F)
        n = x.shape[0]
        mean = jnp.sum(x, axis=0, keepdims=True) * (1.0 / n)         # (1, F)
        cen = x - mean
        var = jnp.sum(cen * cen, axis=0, keepdims=True) * (1.0 / n)  # biased var
        scale = lax.rsqrt(var + eps) * gamma_ref[...]                # fused scale
        y = cen * scale + beta_ref[...]
        y_scratch[...] = jnp.maximum(y, 0.0).astype(y_scratch.dtype)

    # ---- Linear column tile: (N, F) @ (F, TN), bf16 operands, f32 accumulate ----
    z = jnp.dot(y_scratch[...], wt_ref[...],
                preferred_element_type=jnp.float32) + b_ref[...]

    # ---- Dropout (inverted): mask holds 0 or 1/(1-p); all-ones in eval mode ----
    z = z * mask_ref[...]

    # ---- Residual add ----
    o_ref[...] = (x_col_ref[...].astype(jnp.float32) + z).astype(o_ref.dtype)


def fcunit_forward(x, gamma, beta, w, b, *, dropout_p=0.1, eps=1e-5,
                   training=True, rng_key=None, block_n=128):
    N, F = x.shape
    TN = min(int(block_n), F)
    assert F % TN == 0 and TN % 128 == 0, \
        "features must be a multiple of 128 (pad in the caller otherwise)"
    n_tiles = F // TN

    # Weight pre-transposed to (F_in, F_out) and cast to bf16 for the MXU fast path
    # (halves weight DMA bytes; accumulation stays f32).
    wt = w.T.astype(jnp.bfloat16)

    # Inverted-dropout keep mask, precomputed (kernel stays PRNG-free).
    if training and dropout_p > 0.0:
        assert rng_key is not None
        keep = jax.random.bernoulli(rng_key, 1.0 - dropout_p, (N, F))
        mask = keep.astype(jnp.float32) * (1.0 / (1.0 - dropout_p))
    else:
        mask = jnp.ones((N, F), dtype=jnp.float32)

    kernel = functools.partial(fcunit_kernel, eps=float(eps))

    return pl.pallas_call(
        kernel,
        out_shape=jax.ShapeDtypeStruct((N, F), x.dtype),
        grid_spec=pltpu.PrefetchScalarGridSpec(
            num_scalar_prefetch=0,
            grid=(n_tiles,),
            in_specs=[
                # x, full extent: same block every step -> DMA'd once, stays resident.
                pl.BlockSpec((N, F), lambda j: (0, 0)),
                # x, column tile for the residual add (lane-dense, pipelined).
                pl.BlockSpec((N, TN), lambda j: (0, j)),
                pl.BlockSpec((1, F), lambda j: (0, 0)),    # gamma
                pl.BlockSpec((1, F), lambda j: (0, 0)),    # beta
                pl.BlockSpec((F, TN), lambda j: (0, j)),   # W^T tile (bf16)
                pl.BlockSpec((1, TN), lambda j: (0, j)),   # bias tile
                pl.BlockSpec((N, TN), lambda j: (0, j)),   # dropout mask tile
            ],
            out_specs=pl.BlockSpec((N, TN), lambda j: (0, j)),
            scratch_shapes=[pltpu.VMEM((N, F), jnp.bfloat16)],  # BN+ReLU result
        ),
        # "arbitrary": the j==0 step initializes the shared y scratch, so the axis
        # must run sequentially on one core.
        compiler_params=pltpu.CompilerParams(
            dimension_semantics=("arbitrary",)),
    )(x, x, gamma.reshape(1, F), beta.reshape(1, F), wt,
      b.reshape(1, F), mask)


if __name__ == "__main__":
    N, F = 16, 256            # batch, features (F multiple of 128; 2 column tiles)
    dropout_p = 0.1

    key = jax.random.PRNGKey(0)
    kx, kw, kb, kd = jax.random.split(key, 4)

    x = jax.random.normal(kx, (N, F), dtype=jnp.float32)

    # Deterministic parameter init (shapes from FCUnit.__init__):
    gamma = jnp.ones((F,), dtype=jnp.float32)     # BatchNorm1d.weight
    beta = jnp.zeros((F,), dtype=jnp.float32)     # BatchNorm1d.bias
    bound = 1.0 / (F ** 0.5)
    w = jax.random.uniform(kw, (F, F), minval=-bound, maxval=bound,
                           dtype=jnp.float32)     # Linear.weight (out, in)
    b = jax.random.uniform(kb, (F,), minval=-bound, maxval=bound,
                           dtype=jnp.float32)     # Linear.bias

    out = fcunit_forward(x, gamma, beta, w, b,
                         dropout_p=dropout_p, training=True, rng_key=kd)
    jax.block_until_ready(out)

    assert out.shape == (N, F) and out.dtype == x.dtype
    assert bool(jnp.all(jnp.isfinite(out)))
    print("KERNEL_OK")
</pallas_src>

<mosaic_0001>
module attributes {stable_mosaic.version = 11 : i64} {
  func.func @fcunit_kernel(%arg0: i32, %arg1: memref<16x256xf32, #tpu.memory_space<vmem>>, %arg2: memref<16x128xf32, #tpu.memory_space<vmem>>, %arg3: memref<1x256xf32, #tpu.memory_space<vmem>>, %arg4: memref<1x256xf32, #tpu.memory_space<vmem>>, %arg5: memref<256x128xbf16, #tpu.memory_space<vmem>>, %arg6: memref<1x128xf32, #tpu.memory_space<vmem>>, %arg7: memref<16x128xf32, #tpu.memory_space<vmem>>, %arg8: memref<16x128xf32, #tpu.memory_space<vmem>>, %arg9: memref<16x256xbf16, #tpu.memory_space<vmem>>) attributes {dimension_semantics = [#tpu.dimension_semantics<arbitrary>], iteration_bounds = array<i64: 2>, scalar_prefetch = 0 : i64, scratch_operands = 1 : i64, tpu.core_type = #tpu.core_type<tc>, window_params = [{pipeline_mode = #tpu.pipeline_mode<synchronous>, transform_indices = @transform_0, window_bounds = array<i64: 16, 256>}, {transform_indices = @transform_1, window_bounds = array<i64: 16, 128>}, {pipeline_mode = #tpu.pipeline_mode<synchronous>, transform_indices = @transform_2, window_bounds = array<i64: 1, 256>}, {pipeline_mode = #tpu.pipeline_mode<synchronous>, transform_indices = @transform_3, window_bounds = array<i64: 1, 256>}, {transform_indices = @transform_4, window_bounds = array<i64: 256, 128>}, {transform_indices = @transform_5, window_bounds = array<i64: 1, 128>}, {transform_indices = @transform_6, window_bounds = array<i64: 16, 128>}, {transform_indices = @transform_7, window_bounds = array<i64: 16, 128>}]} {
    %c0_i32 = arith.constant 0 : i32
    %0 = arith.cmpi eq, %arg0, %c0_i32 : i32
    %1 = arith.extui %0 : i1 to i32
    %c0_i32_0 = arith.constant 0 : i32
    %2 = arith.cmpi ne, %1, %c0_i32_0 : i32
    scf.if %2 {
      %c0_12 = arith.constant 0 : index
      %c0_13 = arith.constant 0 : index
      %14 = vector.load %arg1[%c0_12, %c0_13] : memref<16x256xf32, #tpu.memory_space<vmem>>, vector<16x256xf32>
      %cst_14 = arith.constant dense<0.000000e+00> : vector<256xf32>
      %15 = vector.multi_reduction <add>, %14, %cst_14 [0] : vector<16x256xf32> to vector<256xf32>
      %16 = vector.shape_cast %15 : vector<256xf32> to vector<1x256xf32>
      %cst_15 = arith.constant 6.250000e-02 : f32
      %17 = vector.broadcast %cst_15 : f32 to vector<1x256xf32>
      %18 = arith.mulf %16, %17 : vector<1x256xf32>
      %19 = vector.broadcast %18 : vector<1x256xf32> to vector<16x256xf32>
      %20 = arith.subf %14, %19 : vector<16x256xf32>
      %21 = arith.mulf %20, %20 : vector<16x256xf32>
      %cst_16 = arith.constant dense<0.000000e+00> : vector<256xf32>
      %22 = vector.multi_reduction <add>, %21, %cst_16 [0] : vector<16x256xf32> to vector<256xf32>
      %23 = vector.shape_cast %22 : vector<256xf32> to vector<1x256xf32>
      %cst_17 = arith.constant 6.250000e-02 : f32
      %24 = vector.broadcast %cst_17 : f32 to vector<1x256xf32>
      %25 = arith.mulf %23, %24 : vector<1x256xf32>
      %cst_18 = arith.constant 9.99999974E-6 : f32
      %26 = vector.broadcast %cst_18 : f32 to vector<1x256xf32>
      %27 = arith.addf %25, %26 : vector<1x256xf32>
      %28 = math.rsqrt %27 : vector<1x256xf32>
      %c0_19 = arith.constant 0 : index
      %c0_20 = arith.constant 0 : index
      %29 = vector.load %arg3[%c0_19, %c0_20] : memref<1x256xf32, #tpu.memory_space<vmem>>, vector<1x256xf32>
      %30 = arith.mulf %28, %29 : vector<1x256xf32>
      %31 = vector.broadcast %30 : vector<1x256xf32> to vector<16x256xf32>
      %32 = arith.mulf %20, %31 : vector<16x256xf32>
      %c0_21 = arith.constant 0 : index
      %c0_22 = arith.constant 0 : index
      %33 = vector.load %arg4[%c0_21, %c0_22] : memref<1x256xf32, #tpu.memory_space<vmem>>, vector<1x256xf32>
      %34 = vector.broadcast %33 : vector<1x256xf32> to vector<16x256xf32>
      %35 = arith.addf %32, %34 : vector<16x256xf32>
      %cst_23 = arith.constant 0.000000e+00 : f32
      %36 = vector.broadcast %cst_23 : f32 to vector<16x256xf32>
      %37 = arith.maximumf %35, %36 : vector<16x256xf32>
      %38 = arith.truncf %37 : vector<16x256xf32> to vector<16x256xbf16>
      %c0_24 = arith.constant 0 : index
      %c0_25 = arith.constant 0 : index
      %39 = vector.load %arg9[%c0_24, %c0_25] : memref<16x256xbf16, #tpu.memory_space<vmem>>, vector<16x256xbf16>
      tpu.vector_store %arg9[%c0_24, %c0_25], %38 {strides = array<i32>} : memref<16x256xbf16, #tpu.memory_space<vmem>>, vector<16x256xbf16>,
    } else {
    }
    %c0 = arith.constant 0 : index
    %c0_1 = arith.constant 0 : index
    %3 = vector.load %arg9[%c0, %c0_1] : memref<16x256xbf16, #tpu.memory_space<vmem>>, vector<16x256xbf16>
    %c0_2 = arith.constant 0 : index
    %c0_3 = arith.constant 0 : index
    %4 = vector.load %arg5[%c0_2, %c0_3] : memref<256x128xbf16, #tpu.memory_space<vmem>>, vector<256x128xbf16>
    %cst = arith.constant dense<0.000000e+00> : vector<16x128xf32>
    %5 = tpu.matmul %3, %4, %cst {dimension_numbers = #tpu.dot_dimension_numbers<[1], [0], [0], [1], [0, 0, 1, 1], [], []>} : vector<16x256xbf16>, vector<256x128xbf16>, vector<16x128xf32> -> vector<16x128xf32>
    %c0_4 = arith.constant 0 : index
    %c0_5 = arith.constant 0 : index
    %6 = vector.load %arg6[%c0_4, %c0_5] : memref<1x128xf32, #tpu.memory_space<vmem>>, vector<1x128xf32>
    %7 = vector.broadcast %6 : vector<1x128xf32> to vector<16x128xf32>
    %8 = arith.addf %5, %7 : vector<16x128xf32>
    %c0_6 = arith.constant 0 : index
    %c0_7 = arith.constant 0 : index
    %9 = vector.load %arg7[%c0_6, %c0_7] : memref<16x128xf32, #tpu.memory_space<vmem>>, vector<16x128xf32>
    %10 = arith.mulf %8, %9 : vector<16x128xf32>
    %c0_8 = arith.constant 0 : index
    %c0_9 = arith.constant 0 : index
    %11 = vector.load %arg2[%c0_8, %c0_9] : memref<16x128xf32, #tpu.memory_space<vmem>>, vector<16x128xf32>
    %12 = arith.addf %11, %10 : vector<16x128xf32>
    %c0_10 = arith.constant 0 : index
    %c0_11 = arith.constant 0 : index
    %13 = vector.load %arg8[%c0_10, %c0_11] : memref<16x128xf32, #tpu.memory_space<vmem>>, vector<16x128xf32>
    tpu.vector_store %arg8[%c0_10, %c0_11], %12 {strides = array<i32>} : memref<16x128xf32, #tpu.memory_space<vmem>>, vector<16x128xf32>,
    return
  }
  func.func @transform_0(%arg0: i32) -> (i32, i32) {
    %c0_i32 = arith.constant 0 : i32
    %c0_i32_0 = arith.constant 0 : i32
    %c0_i32_1 = arith.constant 0 : i32
    return %c0_i32, %c0_i32_0 : i32, i32
  }
  func.func @transform_1(%arg0: i32) -> (i32, i32) {
    %c0_i32 = arith.constant 0 : i32
    %c0_i32_0 = arith.constant 0 : i32
    return %c0_i32, %arg0 : i32, i32
  }
  func.func @transform_2(%arg0: i32) -> (i32, i32) {
    %c0_i32 = arith.constant 0 : i32
    %c0_i32_0 = arith.constant 0 : i32
    %c0_i32_1 = arith.constant 0 : i32
    return %c0_i32, %c0_i32_0 : i32, i32
  }
  func.func @transform_3(%arg0: i32) -> (i32, i32) {
    %c0_i32 = arith.constant 0 : i32
    %c0_i32_0 = arith.constant 0 : i32
    %c0_i32_1 = arith.constant 0 : i32
    return %c0_i32, %c0_i32_0 : i32, i32
  }
  func.func @transform_4(%arg0: i32) -> (i32, i32) {
    %c0_i32 = arith.constant 0 : i32
    %c0_i32_0 = arith.constant 0 : i32
    return %c0_i32, %arg0 : i32, i32
  }
  func.func @transform_5(%arg0: i32) -> (i32, i32) {
    %c0_i32 = arith.constant 0 : i32
    %c0_i32_0 = arith.constant 0 : i32
    return %c0_i32, %arg0 : i32, i32
  }
  func.func @transform_6(%arg0: i32) -> (i32, i32) {
    %c0_i32 = arith.constant 0 : i32
    %c0_i32_0 = arith.constant 0 : i32
    return %c0_i32, %arg0 : i32, i32
  }
  func.func @transform_7(%arg0: i32) -> (i32, i32) {
    %c0_i32 = arith.constant 0 : i32
    %c0_i32_0 = arith.constant 0 : i32
    return %c0_i32, %arg0 : i32, i32
  }
}

</mosaic_0001>

<llo_original>
// kernel: tpu_custom_call.1
$region0: #{tpu_custom_call.1}
  #allocation0 [shape = 'u32[]', space=smem, size = 0x4, offset = 0x4, fixed_abs, tag = 'smem constant byte address 0x4 - core index']
  #allocation1 [shape = 'u32[144,128]{1,0:T(1,128)}', space=vmem, size = 0x12000, scoped, tag = 'internal scratch']
  #allocation2 [shape = 'bf16[16,256]{1,0:T(16,128)(2,1)}', space=vmem, size = 0x2000, scoped, tag = 'scratch operand']
  %s0 = inlined_call_operand.hbm [shape: f32[16,256], index: 0, kind: input, shape index: {}]
  %s1 = inlined_call_operand.hbm [shape: f32[16,256], index: 1, kind: input, shape index: {}]
  %s2 = inlined_call_operand.vmem [shape: f32[1,256], index: 2, kind: input, shape index: {}]
  %s3 = inlined_call_operand.vmem [shape: f32[1,256], index: 3, kind: input, shape index: {}]
  %s4 = inlined_call_operand.hbm [shape: bf16[256,256], index: 4, kind: input, shape index: {}]
  %s5 = inlined_call_operand.vmem [shape: f32[1,256], index: 5, kind: input, shape index: {}]
  %s6 = inlined_call_operand.hbm [shape: f32[16,256], index: 6, kind: input, shape index: {}]
  %s7 = inlined_call_operand.hbm [shape: f32[16,256], index: 7, kind: output, shape index: {}]
  %s8 = sld [smem:[#allocation0]]
  $region81: #{tpu_custom_call.1} parent=0
    _
  %s10 = ssub.s32 1, %s8
  %s11 = scalar_select 0, %s10, %s8
  $region1: #{tpu_custom_call.1} parent=0
    #allocation3 [shape = 'u8[16384]{0}', space=vmem, size = 0x4000, scoped, tag = 'input window, operand 0, single buffered']
    #allocation4 [shape = 's32[2]{0}', space=sflag, size = 0x8, scoped, tag = 'scoped memory for tpu_custom_call.1']
    #allocation5 [shape = 's32[2]{0}', space=sflag, size = 0x8, scoped, tag = 'scoped memory for tpu_custom_call.1']
    #allocation6 [shape = 'u8[16384]{0}', space=vmem, size = 0x4000, scoped, tag = 'input window, operand 1']
    #allocation7 [shape = 's32[2]{0}', space=sflag, size = 0x8, scoped, tag = 'scoped memory for tpu_custom_call.1']
    #allocation8 [shape = 'u8[131072]{0}', space=vmem, size = 0x20000, scoped, tag = 'input window, operand 4']
    #allocation9 [shape = 'u8[16384]{0}', space=vmem, size = 0x4000, scoped, tag = 'input window, operand 6']
    #allocation10 [shape = 's32[2]{0}', space=sflag, size = 0x8, scoped, tag = 'scoped memory for tpu_custom_call.1']
    #allocation11 [shape = 'u8[16384]{0}', space=vmem, size = 0x4000, scoped, tag = 'output window, operand 0']
    %12 = vsyncpa [#allocation4], 0
    %13 = vsyncpa [#allocation7], 0
    %s14 = scalar_lea.sflag [#allocation7], 1
    %15 = vsyncpa %s14, 0
    %16 = vsyncpa [#allocation10], 0
    %s17 = scalar_lea.sflag [#allocation10], 1
    %18 = vsyncpa %s17, 0
    %19 = vsyncpa [#allocation5], 0
    %s20 = scalar_lea.sflag [#allocation5], 1
    %21 = vsyncpa %s20, 0
    loop: start=0, step=1, limit=4
    $region2: #{tpu_custom_call.1} parent=1 // loop_pre_header
      _
    $region3: #{tpu_custom_call.1} parent=1 // loop_header
      %s23 = sphi 0, %s27
      %p24 = scmp.ge.s32.totalorder %s23, 4
      %s31 = sphi 0, %s31
      %s33 = sphi 0, %s31
      %s34 = sphi 0, %s33
      %s48 = sphi 0, %s34
      %s54 = sphi 0, %s56
      %s57 = sphi 0, %s54
      %s58 = sphi 0, %s57
      %s74 = sphi 0, %s58
      %s78 = sphi 0, %s78
      %s80 = sphi 0, %s78
      %s81 = sphi 0, %s80
      %s95 = sphi 0, %s81
      %s99 = sphi 0, %s99
      %s101 = sphi 0, %s99
      %s102 = sphi 0, %s101
      %s116 = sphi 0, %s102
      %s122 = sphi 0, %s124
      %s125 = sphi 0, %s122
      %s126 = sphi 0, %s125
      %s142 = sphi 0, %s126
      %s148 = sphi 0, %s150
      %s151 = sphi 0, %s148
      %s152 = sphi 0, %s151
      %s168 = sphi 0, %s152
      %s174 = sphi 0, %s176
      %s177 = sphi 0, %s174
      %s178 = sphi 0, %s177
      %s194 = sphi 0, %s178
      %s200 = sphi 0, %s202
      %s203 = sphi 0, %s200
      %s204 = sphi 0, %s203
      %s220 = sphi 0, %s204
    $region4: #{tpu_custom_call.1} parent=1 // loop_header_branch
      %26 = sbr.rel (%p24) target = $region8
    $region5: #{tpu_custom_call.1} parent=1 // loop_body
      %s28 = ssub.s32 %s23, 1
      %s29 = ssub.s32 %s23, 2
      %s30 = sadd.s32 %s23, 1
      %s32 = sadd.s32 %s31, 1
      %p35 = scmp.eq.s32.totalorder %s23, 1
      %p36 = scmp.ne.s32.totalorder %s31, %s33
      %p37 = scmp.eq.s32.totalorder %s23, 0
      %p38 = por %p36, %p37
      %p39 = scmp.ne.s32.totalorder %s31, %s33
      %p40 = scmp.eq.s32.totalorder %s28, 1
      %p41 = por %p39, %p40
      %p42 = scmp.ne.s32.totalorder %s33, %s34
      %p43 = scmp.eq.s32.totalorder %s28, 0
      %p44 = por %p42, %p43
      %p45 = scmp.ne.s32.totalorder %s33, %s34
      %p46 = scmp.eq.s32.totalorder %s29, 1
      %p47 = por %p45, %p46
      %p49 = scmp.ne.s32.totalorder %s34, %s48
      %p50 = scmp.eq.s32.totalorder %s29, 0
      %p51 = por %p49, %p50
      %s52 = ssub.s32 %s23, %s30
      %p53 = scmp.eq.s32.totalorder %s52, 0
      %s55 = sadd.s32 %s54, 1
      %s56 = scalar_select %p53, %s54, %s55
      %p59 = pneg %p53
      %p60 = scmp.eq.s32.totalorder %s23, 1
      %p61 = por %p59, %p60
      %p62 = scmp.ne.s32.totalorder %s54, %s57
      %p63 = scmp.eq.s32.totalorder %s23, 0
      %p64 = por %p62, %p63
      %p65 = scmp.ne.s32.totalorder %s54, %s57
      %p66 = scmp.eq.s32.totalorder %s28, 1
      %p67 = por %p65, %p66
      %p68 = scmp.ne.s32.totalorder %s57, %s58
      %p69 = scmp.eq.s32.totalorder %s28, 0
      %p70 = por %p68, %p69
      %p71 = scmp.ne.s32.totalorder %s57, %s58
      %p72 = scmp.eq.s32.totalorder %s29, 1
      %p73 = por %p71, %p72
      %p75 = scmp.ne.s32.totalorder %s58, %s74
      %p76 = scmp.eq.s32.totalorder %s29, 0
      %p77 = por %p75, %p76
      %s79 = sadd.s32 %s78, 1
      %p82 = scmp.eq.s32.totalorder %s23, 1
      %p83 = scmp.ne.s32.totalorder %s78, %s80
      %p84 = scmp.eq.s32.totalorder %s23, 0
      %p85 = por %p83, %p84
      %p86 = scmp.ne.s32.totalorder %s78, %s80
      %p87 = scmp.eq.s32.totalorder %s28, 1
      %p88 = por %p86, %p87
      %p89 = scmp.ne.s32.totalorder %s80, %s81
      %p90 = scmp.eq.s32.totalorder %s28, 0
      %p91 = por %p89, %p90
      %p92 = scmp.ne.s32.totalorder %s80, %s81
      %p93 = scmp.eq.s32.totalorder %s29, 1
      %p94 = por %p92, %p93
      %p96 = scmp.ne.s32.totalorder %s81, %s95
      %p97 = scmp.eq.s32.totalorder %s29, 0
      %p98 = por %p96, %p97
      %s100 = sadd.s32 %s99, 1
      %p103 = scmp.eq.s32.totalorder %s23, 1
      %p104 = scmp.ne.s32.totalorder %s99, %s101
      %p105 = scmp.eq.s32.totalorder %s23, 0
      %p106 = por %p104, %p105
      %p107 = scmp.ne.s32.totalorder %s99, %s101
      %p108 = scmp.eq.s32.totalorder %s28, 1
      %p109 = por %p107, %p108
      %p110 = scmp.ne.s32.totalorder %s101, %s102
      %p111 = scmp.eq.s32.totalorder %s28, 0
      %p112 = por %p110, %p111
      %p113 = scmp.ne.s32.totalorder %s101, %s102
      %p114 = scmp.eq.s32.totalorder %s29, 1
      %p115 = por %p113, %p114
      %p117 = scmp.ne.s32.totalorder %s102, %s116
      %p118 = scmp.eq.s32.totalorder %s29, 0
      %p119 = por %p117, %p118
      %s120 = ssub.s32 %s23, %s30
      %p121 = scmp.eq.s32.totalorder %s120, 0
      %s123 = sadd.s32 %s122, 1
      %s124 = scalar_select %p121, %s122, %s123
      %p127 = pneg %p121
      %p128 = scmp.eq.s32.totalorder %s23, 1
      %p129 = por %p127, %p128
      %p130 = scmp.ne.s32.totalorder %s122, %s125
      %p131 = scmp.eq.s32.totalorder %s23, 0
      %p132 = por %p130, %p131
      %p133 = scmp.ne.s32.totalorder %s122, %s125
      %p134 = scmp.eq.s32.totalorder %s28, 1
      %p135 = por %p133, %p134
      %p136 = scmp.ne.s32.totalorder %s125, %s126
      %p137 = scmp.eq.s32.totalorder %s28, 0
      %p138 = por %p136, %p137
      %p139 = scmp.ne.s32.totalorder %s125, %s126
      %p140 = scmp.eq.s32.totalorder %s29, 1
      %p141 = por %p139, %p140
      %p143 = scmp.ne.s32.totalorder %s126, %s142
      %p144 = scmp.eq.s32.totalorder %s29, 0
      %p145 = por %p143, %p144
      %s146 = ssub.s32 %s23, %s30
      %p147 = scmp.eq.s32.totalorder %s146, 0
      %s149 = sadd.s32 %s148, 1
      %s150 = scalar_select %p147, %s148, %s149
      %p153 = pneg %p147
      %p154 = scmp.eq.s32.totalorder %s23, 1
      %p155 = por %p153, %p154
      %p156 = scmp.ne.s32.totalorder %s148, %s151
      %p157 = scmp.eq.s32.totalorder %s23, 0
      %p158 = por %p156, %p157
      %p159 = scmp.ne.s32.totalorder %s148, %s151
      %p160 = scmp.eq.s32.totalorder %s28, 1
      %p161 = por %p159, %p160
      %p162 = scmp.ne.s32.totalorder %s151, %s152
      %p163 = scmp.eq.s32.totalorder %s28, 0
      %p164 = por %p162, %p163
      %p165 = scmp.ne.s32.totalorder %s151, %s152
      %p166 = scmp.eq.s32.totalorder %s29, 1
      %p167 = por %p165, %p166
      %p169 = scmp.ne.s32.totalorder %s152, %s168
      %p170 = scmp.eq.s32.totalorder %s29, 0
      %p171 = por %p169, %p170
      %s172 = ssub.s32 %s23, %s30
      %p173 = scmp.eq.s32.totalorder %s172, 0
      %s175 = sadd.s32 %s174, 1
      %s176 = scalar_select %p173, %s174, %s175
      %p179 = pneg %p173
      %p180 = scmp.eq.s32.totalorder %s23, 1
      %p181 = por %p179, %p180
      %p182 = scmp.ne.s32.totalorder %s174, %s177
      %p183 = scmp.eq.s32.totalorder %s23, 0
      %p184 = por %p182, %p183
      %p185 = scmp.ne.s32.totalorder %s174, %s177
      %p186 = scmp.eq.s32.totalorder %s28, 1
      %p187 = por %p185, %p186
      %p188 = scmp.ne.s32.totalorder %s177, %s178
      %p189 = scmp.eq.s32.totalorder %s28, 0
      %p190 = por %p188, %p189
      %p191 = scmp.ne.s32.totalorder %s177, %s178
      %p192 = scmp.eq.s32.totalorder %s29, 1
      %p193 = por %p191, %p192
      %p195 = scmp.ne.s32.totalorder %s178, %s194
      %p196 = scmp.eq.s32.totalorder %s29, 0
      %p197 = por %p195, %p196
      %s198 = ssub.s32 %s23, %s30
      %p199 = scmp.eq.s32.totalorder %s198, 0
      %s201 = sadd.s32 %s200, 1
      %s202 = scalar_select %p199, %s200, %s201
      %p205 = pneg %p199
      %p206 = scmp.eq.s32.totalorder %s23, 1
      %p207 = por %p205, %p206
      %p208 = scmp.ne.s32.totalorder %s200, %s203
      %p209 = scmp.eq.s32.totalorder %s23, 0
      %p210 = por %p208, %p209
      %p211 = scmp.ne.s32.totalorder %s200, %s203
      %p212 = scmp.eq.s32.totalorder %s28, 1
      %p213 = por %p211, %p212
      %p214 = scmp.ne.s32.totalorder %s203, %s204
      %p215 = scmp.eq.s32.totalorder %s28, 0
      %p216 = por %p214, %p215
      %p217 = scmp.ne.s32.totalorder %s203, %s204
      %p218 = scmp.eq.s32.totalorder %s29, 1
      %p219 = por %p217, %p218
      %p221 = scmp.ne.s32.totalorder %s204, %s220
      %p222 = scmp.eq.s32.totalorder %s29, 0
      %p223 = por %p221, %p222
      %p224 = scmp.le.s32.totalorder 1, %s23
      %p225 = scmp.lt.s32.totalorder %s23, 3
      %p226 = pnand %p224, %p225
      %p227 = pneg %p226
      // Predicated region
      $region9: #{tpu_custom_call.1} parent=5 // pred_check
        _
      $region10: #{tpu_custom_call.1} parent=5 // pred_check_branch
        %229 = sbr.rel (%p226) target = $region12
      $region11: #{tpu_custom_call.1} parent=5 // pred_region
        %s230 = ssub.s32 %s23, 1
        // Predicated region
        $region13: #{tpu_custom_call.1} parent=11 // pred_check
          %p231 = pneg %p44
        $region14: #{tpu_custom_call.1} parent=11 // pred_check_branch
          %233 = sbr.rel (%p231) target = $region16
        $region15: #{tpu_custom_call.1} parent=11 // pred_region
          %s235 = ssub.s32 512, 512
          %236 = vsyncadd [#allocation4], %s235
          %s237 = sshll.u32 [#allocation3], 4
          %s238 = int_to_ptr.vmem [resolvable:$true] %s237
          %243 = dma.hbm_to_vmem [thread:$0]  %s0, 512, %s238, [#allocation4], 256, 256, 16
        $region16: #{tpu_custom_call.1} parent=11 // pred_fallthru
          _
        // Predicated region
        $region17: #{tpu_custom_call.1} parent=11 // pred_check
          %p244 = pneg %p91
        $region18: #{tpu_custom_call.1} parent=11 // pred_check_branch
          %246 = sbr.rel (%p244) target = $region20
        $region19: #{tpu_custom_call.1} parent=11 // pred_region
          _
        $region20: #{tpu_custom_call.1} parent=11 // pred_fallthru
          _
        // Predicated region
        $region21: #{tpu_custom_call.1} parent=11 // pred_check
          %p247 = pneg %p112
        $region22: #{tpu_custom_call.1} parent=11 // pred_check_branch
          %249 = sbr.rel (%p247) target = $region24
        $region23: #{tpu_custom_call.1} parent=11 // pred_region
          _
        $region24: #{tpu_custom_call.1} parent=11 // pred_fallthru
          _
      $region12: #{tpu_custom_call.1} parent=5 // pred_fallthru
        _
      %p250 = scmp.lt.s32.totalorder %s23, 2
      // Predicated region
      $region25: #{tpu_custom_call.1} parent=5 // pred_check
        %p251 = pneg %p250
      $region26: #{tpu_custom_call.1} parent=5 // pred_check_branch
        %253 = sbr.rel (%p251) target = $region28
      $region27: #{tpu_custom_call.1} parent=5 // pred_region
        // Predicated region
        $region29: #{tpu_custom_call.1} parent=27 // pred_check
          %p254 = pneg %p64
        $region30: #{tpu_custom_call.1} parent=27 // pred_check_branch
          %256 = sbr.rel (%p254) target = $region32
        $region31: #{tpu_custom_call.1} parent=27 // pred_region
          %s257 = sand.u32 %s23, 1
          %s258 = scalar_lea.sflag [#allocation7], %s257
          %s259 = sand.u32 %s54, 1
          %s260 = smul.addr %s259, 16
          %s261 = scalar_lea.vmem [#allocation6], %s260
          %s263 = ssub.s32 256, 256
          %264 = vsyncadd %s258, %s263
          %s265 = smul.addr %s23, 128
          %s266 = scalar_lea.hbm %s1, %s265
          %s267 = sshll.u32 %s261, 4
          %s268 = int_to_ptr.vmem [resolvable:$true] %s267
          %273 = dma.hbm_to_vmem [thread:$0]  %s266, 256, %s268, %s258, 256, 128, 8
        $region32: #{tpu_custom_call.1} parent=27 // pred_fallthru
          _
        // Predicated region
        $region33: #{tpu_custom_call.1} parent=27 // pred_check
          %p274 = pneg %p132
        $region34: #{tpu_custom_call.1} parent=27 // pred_check_branch
          %276 = sbr.rel (%p274) target = $region36
        $region35: #{tpu_custom_call.1} parent=27 // pred_region
          %s277 = sand.u32 %s23, 1
          %s278 = scalar_lea.sflag [#allocation7], %s277
          %s279 = sand.u32 %s122, 1
          %s280 = smul.addr %s279, 128
          %s281 = scalar_lea.vmem [#allocation8], %s280
          %s283 = ssub.s32 2048, 2048
          %284 = vsyncadd %s278, %s283
          %s285 = smul.addr %s23, 64
          %s286 = scalar_lea.hbm %s4, %s285
          %s287 = sshll.u32 %s281, 4
          %s288 = int_to_ptr.vmem [resolvable:$true] %s287
          %293 = dma.hbm_to_vmem [thread:$0]  %s286, 2048, %s288, %s278, 128, 64, 4
        $region36: #{tpu_custom_call.1} parent=27 // pred_fallthru
          _
        // Predicated region
        $region37: #{tpu_custom_call.1} parent=27 // pred_check
          %p294 = pneg %p158
        $region38: #{tpu_custom_call.1} parent=27 // pred_check_branch
          %296 = sbr.rel (%p294) target = $region40
        $region39: #{tpu_custom_call.1} parent=27 // pred_region
          %p297 = scmp.lt.s32.totalorder %s23, 1
          %s298 = scalar_select %p297, %s23, 1
          %s299 = scalar_lea.vmem %s5, %s298
        $region40: #{tpu_custom_call.1} parent=27 // pred_fallthru
          _
        // Predicated region
        $region41: #{tpu_custom_call.1} parent=27 // pred_check
          %p300 = pneg %p184
        $region42: #{tpu_custom_call.1} parent=27 // pred_check_branch
          %302 = sbr.rel (%p300) target = $region44
        $region43: #{tpu_custom_call.1} parent=27 // pred_region
          %s303 = sand.u32 %s174, 1
          %s304 = scalar_lea.sflag [#allocation10], %s303
          %s305 = sand.u32 %s174, 1
          %s306 = smul.addr %s305, 16
          %s307 = scalar_lea.vmem [#allocation9], %s306
          %s309 = ssub.s32 256, 256
          %310 = vsyncadd %s304, %s309
          %s311 = smul.addr %s23, 128
          %s312 = scalar_lea.hbm %s6, %s311
          %s313 = sshll.u32 %s307, 4
          %s314 = int_to_ptr.vmem [resolvable:$true] %s313
          %319 = dma.hbm_to_vmem [thread:$0]  %s312, 256, %s314, %s304, 256, 128, 8
        $region44: #{tpu_custom_call.1} parent=27 // pred_fallthru
          _
      $region28: #{tpu_custom_call.1} parent=5 // pred_fallthru
        _
      %p320 = scmp.le.s32.totalorder 1, %s23
      %p321 = scmp.lt.s32.totalorder %s23, 3
      %p322 = pnand %p320, %p321
      %p323 = pneg %p322
      // Predicated region
      $region45: #{tpu_custom_call.1} parent=5 // pred_check
        _
      $region46: #{tpu_custom_call.1} parent=5 // pred_check_branch
        %325 = sbr.rel (%p322) target = $region48
      $region47: #{tpu_custom_call.1} parent=5 // pred_region
        %s326 = ssub.s32 %s23, 1
        // Predicated region
        $region49: #{tpu_custom_call.1} parent=47 // pred_check
          %p327 = pneg %p44
        $region50: #{tpu_custom_call.1} parent=47 // pred_check_branch
          %329 = sbr.rel (%p327) target = $region52
        $region51: #{tpu_custom_call.1} parent=47 // pred_region
          %330 = dma.done [#allocation4], 512
        $region52: #{tpu_custom_call.1} parent=47 // pred_fallthru
          _
        %s331 = sand.u32 %s28, 1
        %s332 = scalar_lea.sflag [#allocation7], %s331
        %s333 = sand.u32 %s57, 1
        %s334 = smul.addr %s333, 16
        %s335 = scalar_lea.vmem [#allocation6], %s334
        // Predicated region
        $region53: #{tpu_custom_call.1} parent=47 // pred_check
          %p336 = pneg %p70
        $region54: #{tpu_custom_call.1} parent=47 // pred_check_branch
          %338 = sbr.rel (%p336) target = $region56
        $region55: #{tpu_custom_call.1} parent=47 // pred_region
          %339 = dma.done %s332, 256
        $region56: #{tpu_custom_call.1} parent=47 // pred_fallthru
          _
        %s340 = sand.u32 %s28, 1
        %s341 = scalar_lea.sflag [#allocation7], %s340
        %s342 = sand.u32 %s125, 1
        %s343 = smul.addr %s342, 128
        %s344 = scalar_lea.vmem [#allocation8], %s343
        // Predicated region
        $region57: #{tpu_custom_call.1} parent=47 // pred_check
          %p345 = pneg %p138
        $region58: #{tpu_custom_call.1} parent=47 // pred_check_branch
          %347 = sbr.rel (%p345) target = $region60
        $region59: #{tpu_custom_call.1} parent=47 // pred_region
          %348 = dma.done %s341, 2048
        $region60: #{tpu_custom_call.1} parent=47 // pred_fallthru
          _
        %s349 = sand.u32 %s177, 1
        %s350 = scalar_lea.sflag [#allocation10], %s349
        %s351 = sand.u32 %s177, 1
        %s352 = smul.addr %s351, 16
        %s353 = scalar_lea.vmem [#allocation9], %s352
        // Predicated region
        $region61: #{tpu_custom_call.1} parent=47 // pred_check
          %p354 = pneg %p190
        $region62: #{tpu_custom_call.1} parent=47 // pred_check_branch
          %356 = sbr.rel (%p354) target = $region64
        $region63: #{tpu_custom_call.1} parent=47 // pred_region
          %357 = dma.done %s350, 256
        $region64: #{tpu_custom_call.1} parent=47 // pred_fallthru
          _
        %p358 = pneg %p44
        %p359 = pneg %p41
        %s360 = sand.u32 %s28, 1
        %s361 = scalar_lea.sflag [#allocation7], %s360
        %s362 = sand.u32 %s57, 1
        %s363 = smul.addr %s362, 16
        %s364 = scalar_lea.vmem [#allocation6], %s363
        %p365 = pneg %p70
        %p366 = pneg %p67
        %p367 = pneg %p91
        %p368 = pneg %p88
        %p369 = pneg %p112
        %p370 = pneg %p109
        %s371 = sand.u32 %s28, 1
        %s372 = scalar_lea.sflag [#allocation7], %s371
        %s373 = sand.u32 %s125, 1
        %s374 = smul.addr %s373, 128
        %s375 = scalar_lea.vmem [#allocation8], %s374
        %p376 = pneg %p138
        %p377 = pneg %p135
        %p378 = scmp.lt.s32.totalorder %s28, 1
        %s379 = scalar_select %p378, %s28, 1
        %s380 = scalar_lea.vmem %s5, %s379
        %p381 = pneg %p164
        %p382 = pneg %p161
        %s383 = sand.u32 %s177, 1
        %s384 = scalar_lea.sflag [#allocation10], %s383
        %s385 = sand.u32 %s177, 1
        %s386 = smul.addr %s385, 16
        %s387 = scalar_lea.vmem [#allocation9], %s386
        %p388 = pneg %p190
        %p389 = pneg %p187
        %p390 = pneg %p216
        %p391 = pneg %p213
        %s392 = sand.u32 %s203, 1
        %s393 = scalar_lea.sflag [#allocation5], %s392
        %s394 = sand.u32 %s203, 1
        %s395 = smul.addr %s394, 16
        %s396 = scalar_lea.vmem [#allocation11], %s395
        %p397 = scmp.lt.s32.totalorder %s28, 1
        %s398 = scalar_select %p397, %s28, 1
        %s399 = scalar_lea.vmem %s5, %s398
        %p401 = scmp.eq.s32.totalorder %s28, 0
        // Predicated region
        $region65: #{tpu_custom_call.1} parent=47 // pred_check
          %p402 = pneg %p401
        $region66: #{tpu_custom_call.1} parent=47 // pred_check_branch
          %404 = sbr.rel (%p402) target = $region68
        $region67: #{tpu_custom_call.1} parent=47 // pred_region
          %v405 = vld [vmem:[#allocation3] sm:$0xff]
          %v406 = vld [vmem:[#allocation3 + $0x8] sm:$0xff]
          %v407 = vld [vmem:[#allocation3 + $0x10] sm:$0xff]
          %v408 = vld [vmem:[#allocation3 + $0x18] sm:$0xff]
          %v409 = vadd.f32 %v405, %v407
          %v410 = vrot.slane %v409, 4
          %v411 = vadd.f32 %v409, %v410
          %v412 = vrot.slane %v411, 2
          %v413 = vadd.f32 %v411, %v412
          %v414 = vrot.slane %v413, 1
          %v415 = vadd.f32 %v413, %v414
          %v416 = vadd.f32 %v406, %v408
          %v417 = vrot.slane %v416, 4
          %v418 = vadd.f32 %v416, %v417
          %v419 = vrot.slane %v418, 2
          %v420 = vadd.f32 %v418, %v419
          %v421 = vrot.slane %v420, 1
          %v422 = vadd.f32 %v420, %v421
          %v423 = vmul.f32 %v415, 0.0625
          %v424 = vmul.f32 %v422, 0.0625
          %v425 = vsub.f32 %v405, %v423
          %v426 = vsub.f32 %v406, %v424
          %v427 = vsub.f32 %v407, %v423
          %v428 = vsub.f32 %v408, %v424
          %v429 = vmul.f32 %v425, %v425
          %v430 = vmul.f32 %v426, %v426
          %v431 = vmul.f32 %v427, %v427
          %v432 = vmul.f32 %v428, %v428
          %v433 = vadd.f32 %v429, %v431
          %v434 = vrot.slane %v433, 4
          %v435 = vadd.f32 %v433, %v434
          %v436 = vrot.slane %v435, 2
          %v437 = vadd.f32 %v435, %v436
          %v438 = vrot.slane %v437, 1
          %v439 = vadd.f32 %v437, %v438
          %v440 = vadd.f32 %v430, %v432
          %v441 = vrot.slane %v440, 4
          %v442 = vadd.f32 %v440, %v441
          %v443 = vrot.slane %v442, 2
          %v444 = vadd.f32 %v442, %v443
          %v445 = vrot.slane %v444, 1
          %v446 = vadd.f32 %v444, %v445
          %v447 = vmul.f32 %v439, 0.0625
          %v448 = vmul.f32 %v446, 0.0625
          %v449 = vadd.f32 %v447, 1e-05
          %v450 = vadd.f32 %v448, 1e-05
          %v451 = vrsqrt.pop %v449
          %v452 = vrsqrt.pop %v450
          %v453 = vld [vmem:[%s2] sm:$0x3]
          %v455 = vlaneseq
          %v456 = vshrl.u32 %v455, 7
          %v457 = vsub.s32 0, %v456
          %v458 = vrot.slane %v453, %v457
          %v459 = vlaneseq
          %v460 = vshrl.u32 %v459, 7
          %v461 = vsub.s32 1, %v460
          %v462 = vrot.slane %v453, %v461
          %v465 = vmul.f32 %v451, %v458
          %v466 = vmul.f32 %v452, %v462
          %v467 = vlaneseq
          %v468 = vshrl.u32 %v467, 7
          %v469 = vsub.s32 0, %v468
          %v470 = vrot.slane %v465, %v469
          %v471 = vlaneseq
          %v472 = vshrl.u32 %v471, 7
          %v473 = vsub.s32 0, %v472
          %v474 = vrot.slane %v466, %v473
          %v475 = vmul.f32 %v425, %v470
          %v476 = vmul.f32 %v426, %v474
          %v477 = vmul.f32 %v427, %v470
          %v478 = vmul.f32 %v428, %v474
          %v479 = vld [vmem:[%s3] sm:$0x3]
          %v481 = vlaneseq
          %v482 = vshrl.u32 %v481, 7
          %v483 = vsub.s32 0, %v482
          %v484 = vrot.slane %v479, %v483
          %v485 = vlaneseq
          %v486 = vshrl.u32 %v485, 7
          %v487 = vsub.s32 1, %v486
          %v488 = vrot.slane %v479, %v487
          %v491 = vadd.f32 %v475, %v484
          %v492 = vadd.f32 %v476, %v488
          %v493 = vadd.f32 %v477, %v484
          %v494 = vadd.f32 %v478, %v488
          %v495 = vmax.f32 %v491, 0.0
          %v496 = vmax.f32 %v492, 0.0
          %v497 = vmax.f32 %v493, 0.0
          %v498 = vmax.f32 %v494, 0.0
          %v499 = vpack.c.bf16 %v497, %v495
          %v500 = vpack.c.bf16 %v498, %v496
          %501 = vst [vmem:[#allocation2] sm:$0xff] %v499
          %502 = vst [vmem:[#allocation2 + $0x8] sm:$0xff] %v500
        $region68: #{tpu_custom_call.1} parent=47 // pred_fallthru
          _
        %v503 = vld [vmem:[#allocation2] sm:$0xff]
        %v504 = vld [vmem:[#allocation2 + $0x8] sm:$0xff]
        %v505 = vld [vmem:[%s344] sm:$0xf]
        %v506 = vld [vmem:[%s344 + $0x4] sm:$0xf]
        %v507 = vld [vmem:[%s344 + $0x8] sm:$0xf]
        %v508 = vld [vmem:[%s344 + $0xc] sm:$0xf]
        %v509 = vld [vmem:[%s344 + $0x10] sm:$0xf]
        %v510 = vld [vmem:[%s344 + $0x14] sm:$0xf]
        %v511 = vld [vmem:[%s344 + $0x18] sm:$0xf]
        %v512 = vld [vmem:[%s344 + $0x1c] sm:$0xf]
        %v513 = vld [vmem:[%s344 + $0x20] sm:$0xf]
        %v514 = vld [vmem:[%s344 + $0x24] sm:$0xf]
        %v515 = vld [vmem:[%s344 + $0x28] sm:$0xf]
        %v516 = vld [vmem:[%s344 + $0x2c] sm:$0xf]
        %v517 = vld [vmem:[%s344 + $0x30] sm:$0xf]
        %v518 = vld [vmem:[%s344 + $0x34] sm:$0xf]
        %v519 = vld [vmem:[%s344 + $0x38] sm:$0xf]
        %v520 = vld [vmem:[%s344 + $0x3c] sm:$0xf]
        %v521 = vld [vmem:[%s344 + $0x40] sm:$0xf]
        %v522 = vld [vmem:[%s344 + $0x44] sm:$0xf]
        %v523 = vld [vmem:[%s344 + $0x48] sm:$0xf]
        %v524 = vld [vmem:[%s344 + $0x4c] sm:$0xf]
        %v525 = vld [vmem:[%s344 + $0x50] sm:$0xf]
        %v526 = vld [vmem:[%s344 + $0x54] sm:$0xf]
        %v527 = vld [vmem:[%s344 + $0x58] sm:$0xf]
        %v528 = vld [vmem:[%s344 + $0x5c] sm:$0xf]
        %v529 = vld [vmem:[%s344 + $0x60] sm:$0xf]
        %v530 = vld [vmem:[%s344 + $0x64] sm:$0xf]
        %v531 = vld [vmem:[%s344 + $0x68] sm:$0xf]
        %v532 = vld [vmem:[%s344 + $0x6c] sm:$0xf]
        %v533 = vld [vmem:[%s344 + $0x70] sm:$0xf]
        %v534 = vld [vmem:[%s344 + $0x74] sm:$0xf]
        %v535 = vld [vmem:[%s344 + $0x78] sm:$0xf]
        %v536 = vld [vmem:[%s344 + $0x7c] sm:$0xf]
        %v537 = vld [vmem:[%s399] sm:$0x1]
        %v539 = vlaneseq
        %v540 = vshrl.u32 %v539, 7
        %v541 = vsub.s32 0, %v540
        %v542 = vrot.slane %v537, %v541
        %v576 = vunpack.c.l.b16 %v505
        %v577 = vunpack.c.l.b16 %v506
        %v578 = vunpack.c.l.b16 %v507
        %v579 = vunpack.c.l.b16 %v508
        %v580 = vunpack.c.l.b16 %v509
        %v581 = vunpack.c.l.b16 %v510
        %v582 = vunpack.c.l.b16 %v511
        %v583 = vunpack.c.l.b16 %v512
        %v584 = vunpack.c.l.b16 %v513
        %v585 = vunpack.c.l.b16 %v514
        %v586 = vunpack.c.l.b16 %v515
        %v587 = vunpack.c.l.b16 %v516
        %v588 = vunpack.c.l.b16 %v517
        %v589 = vunpack.c.l.b16 %v518
        %v590 = vunpack.c.l.b16 %v519
        %v591 = vunpack.c.l.b16 %v520
        %v592 = vunpack.c.l.b16 %v521
        %v593 = vunpack.c.l.b16 %v522
        %v594 = vunpack.c.l.b16 %v523
        %v595 = vunpack.c.l.b16 %v524
        %v596 = vunpack.c.l.b16 %v525
        %v597 = vunpack.c.l.b16 %v526
        %v598 = vunpack.c.l.b16 %v527
        %v599 = vunpack.c.l.b16 %v528
        %v600 = vunpack.c.l.b16 %v529
        %v601 = vunpack.c.l.b16 %v530
        %v602 = vunpack.c.l.b16 %v531
        %v603 = vunpack.c.l.b16 %v532
        %v604 = vunpack.c.l.b16 %v533
        %v605 = vunpack.c.l.b16 %v534
        %v606 = vunpack.c.l.b16 %v535
        %v607 = vunpack.c.l.b16 %v536
        %v608 = vpack.c.b16 %v577, %v576
        %v609 = vpack.c.b16 %v579, %v578
        %v610 = vpack.c.b16 %v581, %v580
        %v611 = vpack.c.b16 %v583, %v582
        %v612 = vpack.c.b16 %v585, %v584
        %v613 = vpack.c.b16 %v587, %v586
        %v614 = vpack.c.b16 %v589, %v588
        %v615 = vpack.c.b16 %v591, %v590
        %v616 = vpack.c.b16 %v593, %v592
        %v617 = vpack.c.b16 %v595, %v594
        %v618 = vpack.c.b16 %v597, %v596
        %v619 = vpack.c.b16 %v599, %v598
        %v620 = vpack.c.b16 %v601, %v600
        %v621 = vpack.c.b16 %v603, %v602
        %v622 = vpack.c.b16 %v605, %v604
        %v623 = vpack.c.b16 %v607, %v606
        %640 = vmatprep.subr.bf16.mxu0 0
        %641 = vmatpush1.bf16.msra.mxu0 %v608
        %642 = vmatprep.subr.bf16.mxu0 0
        %643 = vmatpush1.bf16.msra.mxu0 %v609
        %644 = vmatprep.subr.bf16.mxu0 0
        %645 = vmatpush1.bf16.msra.mxu0 %v610
        %646 = vmatprep.subr.bf16.mxu0 0
        %647 = vmatpush1.bf16.msra.mxu0 %v611
        %648 = vmatprep.subr.bf16.mxu0 0
        %649 = vmatpush1.bf16.msra.mxu0 %v612
        %650 = vmatprep.subr.bf16.mxu0 0
        %651 = vmatpush1.bf16.msra.mxu0 %v613
        %652 = vmatprep.subr.bf16.mxu0 0
        %653 = vmatpush1.bf16.msra.mxu0 %v614
        %654 = vmatprep.subr.bf16.mxu0 0
        %655 = vmatpush1.bf16.msra.mxu0 %v615
        %656 = vmatprep.subr.bf16.mxu0 0
        %657 = vmatpush1.bf16.msra.mxu0 %v616
        %658 = vmatprep.subr.bf16.mxu0 0
        %659 = vmatpush1.bf16.msra.mxu0 %v617
        %660 = vmatprep.subr.bf16.mxu0 0
        %661 = vmatpush1.bf16.msra.mxu0 %v618
        %662 = vmatprep.subr.bf16.mxu0 0
        %663 = vmatpush1.bf16.msra.mxu0 %v619
        %664 = vmatprep.subr.bf16.mxu0 0
        %665 = vmatpush1.bf16.msra.mxu0 %v620
        %666 = vmatprep.subr.bf16.mxu0 0
        %667 = vmatpush1.bf16.msra.mxu0 %v621
        %668 = vmatprep.subr.bf16.mxu0 0
        %669 = vmatpush1.bf16.msra.mxu0 %v622
        %670 = vmatprep.subr.bf16.mxu0 0
        %671 = vmatpush1.bf16.msra.mxu0 %v623
        %672 = vmatprep.mubr.bf16.mxu0 %v504
        %673 = vmatmul.mubr.bf16.gmra.mrb[0].mxu0 %v503
        %v674 = vpop.f32.mrb[0].mxu0
        %v675 = vadd.f32 %v542, %v674
        %v676 = vpop.f32.mrb[0].mxu0
        %v677 = vpop.f32.mrb[0].mxu0
        %v678 = vadd.f32 %v542, %v677
        %v679 = vpop.f32.mrb[0].mxu0
        %680 = vdwg.mxu0
        %v681 = vld [vmem:[%s353] sm:$0xff]
        %v682 = vld [vmem:[%s353 + $0x8] sm:$0xff]
        %v683 = vmul.f32 %v675, %v681
        %v684 = vmul.f32 %v678, %v682
        %v685 = vld [vmem:[%s335] sm:$0xff]
        %v686 = vld [vmem:[%s335 + $0x8] sm:$0xff]
        %v687 = vadd.f32 %v685, %v683
        %v688 = vadd.f32 %v686, %v684
        %689 = vst [vmem:[%s396] sm:$0xff] %v687
        %690 = vst [vmem:[%s396 + $0x8] sm:$0xff] %v688
        %s691 = sand.u32 %s203, 1
        %s692 = scalar_lea.sflag [#allocation5], %s691
        %s693 = sand.u32 %s203, 1
        %s694 = smul.addr %s693, 16
        %s695 = scalar_lea.vmem [#allocation11], %s694
        // Predicated region
        $region69: #{tpu_custom_call.1} parent=47 // pred_check
          %p696 = pneg %p213
        $region70: #{tpu_custom_call.1} parent=47 // pred_check_branch
          %698 = sbr.rel (%p696) target = $region72
        $region71: #{tpu_custom_call.1} parent=47 // pred_region
          %s700 = ssub.s32 256, 256
          %701 = vsyncadd %s692, %s700
          %s702 = smul.addr %s28, 128
          %s703 = scalar_lea.hbm %s7, %s702
          %s704 = sshll.u32 %s695, 4
          %s705 = int_to_ptr.vmem [resolvable:$true] %s704
          %710 = dma.vmem_to_hbm [thread:$0]  %s705, 256, %s703, %s692, 128, 256, 8
        $region72: #{tpu_custom_call.1} parent=47 // pred_fallthru
          _
      $region48: #{tpu_custom_call.1} parent=5 // pred_fallthru
        _
      %p711 = scmp.le.s32.totalorder 2, %s23
      // Predicated region
      $region73: #{tpu_custom_call.1} parent=5 // pred_check
        %p712 = pneg %p711
      $region74: #{tpu_custom_call.1} parent=5 // pred_check_branch
        %714 = sbr.rel (%p712) target = $region76
      $region75: #{tpu_custom_call.1} parent=5 // pred_region
        %s715 = ssub.s32 %s23, 2
        // Predicated region
        $region77: #{tpu_custom_call.1} parent=75 // pred_check
          %p716 = pneg %p219
        $region78: #{tpu_custom_call.1} parent=75 // pred_check_branch
          %718 = sbr.rel (%p716) target = $region80
        $region79: #{tpu_custom_call.1} parent=75 // pred_region
          %s719 = sand.u32 %s204, 1
          %s720 = scalar_lea.sflag [#allocation5], %s719
          %s721 = sand.u32 %s204, 1
          %s722 = smul.addr %s721, 16
          %s723 = scalar_lea.vmem [#allocation11], %s722
          %724 = dma.done %s720, 256
        $region80: #{tpu_custom_call.1} parent=75 // pred_fallthru
          _
      $region76: #{tpu_custom_call.1} parent=5 // pred_fallthru
        _
    $region6: #{tpu_custom_call.1} parent=1 // loop_footer
      %s27 = sadd.s32 1, %s23
    $region7: #{tpu_custom_call.1} parent=1 // loop_footer_branch
      %22 = sbr.rel target = $region3
    $region8: #{tpu_custom_call.1} parent=1 // loop_exit
      _
    %725 = vsyncpa [#allocation4], 1
    %s726 = scalar_lea.sflag [#allocation4], 1
    %727 = vsyncpa %s726, 1
    %728 = vsyncpa [#allocation7], 1
    %s729 = scalar_lea.sflag [#allocation7], 1
    %730 = vsyncpa %s729, 1
    %731 = vsyncpa [#allocation10], 1
    %s732 = scalar_lea.sflag [#allocation10], 1
    %733 = vsyncpa %s732, 1
    %734 = vsyncpa [#allocation5], 1
    %s735 = scalar_lea.sflag [#allocation5], 1
    %736 = vsyncpa %s735, 1

</llo_original>
